<compile_context>
chip_gen: v5e
topology: v5e:2x2
jax: 0.10.0
libtpu: 0.0.40
codegen_flags: <defaults>
</compile_context>

<pallas_src>
import functools

import jax
import jax.numpy as jnp
from jax.experimental import pallas as pl
from jax.experimental.pallas import tpu as pltpu


# Per-block budget ~2 MiB -> with double-buffered in+out that is ~8 MiB of
# pipeline VMEM, comfortably inside the default scoped limit on v5e/v6e/v7x.
_TARGET_BLOCK_BYTES = 2 * 1024 * 1024
_VMEM_LIMIT_BYTES = 32 * 1024 * 1024      # explicit, safe on all generations


# ---------------------------------------------------------------------------
# Kernel 1: observer reduction
#   alpha = mean_over_batch( max_over_CHW( |X| ) )
# Grid iterates over CHW chunks (reduction axis, "arbitrary"); the per-sample
# running max lives in VMEM scratch, the (1,1) output is resident across steps.
# ---------------------------------------------------------------------------
def _absmax_mean_kernel(x_ref, o_ref, rowmax_ref):
    k = pl.program_id(0)

    @pl.when(k == 0)
    def _init():
        rowmax_ref[...] = jnp.zeros_like(rowmax_ref)     # |x| >= 0

    ax = jnp.abs(x_ref[...].astype(jnp.float32))         # (N, CK)
    rowmax_ref[...] = jnp.maximum(rowmax_ref[...],
                                  jnp.max(ax, axis=1, keepdims=True))

    @pl.when(k == pl.num_programs(0) - 1)
    def _finalize():
        o_ref[...] = jnp.mean(rowmax_ref[...], axis=0, keepdims=True)


# ---------------------------------------------------------------------------
# Kernel 2: clamp to [-alpha, alpha] + fake_quantize_per_tensor_affine
#   q   = clamp(round(x * inv_scale), qmin - zp, qmax - zp)   (zp folded in)
#   out = q * scale
# ---------------------------------------------------------------------------
def _fake_quant_kernel(alpha_ref, inv_scale_ref, scale_ref, x_ref, o_ref, *,
                       qmin_z, qmax_z):
    # scalar reads hoisted once per grid step (SMEM)
    a = alpha_ref[0]
    inv_s = inv_scale_ref[0]
    s = scale_ref[0]

    x = x_ref[...].astype(jnp.float32)
    # torch.max(torch.min(X, alpha), -alpha)
    xc = jnp.maximum(jnp.minimum(x, a), -a)
    # round-half-to-even matches torch nearbyint; zero_point folded into bounds
    q = jnp.clip(jnp.round(xc * inv_s), qmin_z, qmax_z)
    o_ref[...] = (q * s).astype(o_ref.dtype)


# ---------------------------------------------------------------------------
# Tiling helpers (pure Python, trace-time only)
# ---------------------------------------------------------------------------
def _observer_chunk(chw, n, itemsize, target_block_bytes=_TARGET_BLOCK_BYTES):
    """Largest multiple-of-128 divisor of CHW whose (N, CK) block fits budget."""
    max_ck = (target_block_bytes // max(1, n * itemsize)) // 128 * 128
    max_ck = max(128, min(max_ck, chw, 64 * 1024))
    if chw <= max_ck:
        return chw                                   # single block == full array
    for cand in range(max_ck, 127, -128):
        if chw % cand == 0:
            return cand
    return 128                                       # always divides (chw % 128 == 0)


def _flat_layout(total, itemsize, target_block_bytes=_TARGET_BLOCK_BYTES):
    """Lane-dense 2D view (rows, lanes) + block row count for elementwise pass."""
    lanes = 128
    for cand in (4096, 2048, 1024, 512, 256):        # prefer wide, unmasked stores
        if total % cand == 0:
            lanes = cand
            break
    rows = total // lanes
    target_rows = max(8, (target_block_bytes // (lanes * itemsize)) // 8 * 8)
    if rows <= target_rows:
        return rows, lanes, rows                     # whole array is one block
    br = None
    for cand in range(target_rows, 7, -8):           # largest mult-of-8 divisor
        if rows % cand == 0:
            br = cand
            break
    if br is None:
        br = target_rows                             # ragged last block (padded/masked)
    return rows, lanes, br


# ---------------------------------------------------------------------------
# Wrapper reproducing LearnableFakeQuantize.forward
# ---------------------------------------------------------------------------
def learnable_fake_quantize_forward(x, alpha, *, dtype="quint8",
                                    reduce_range=False, observe=None):
    """Returns (output, new_alpha, scale, zero_point).

    `observe` is a static flag: run the alpha observer (first call).  If None,
    it is derived eagerly from whether alpha is +inf; when calling under jit,
    pass observe=True/False explicitly.
    """
    # quant range exactly as in __init__
    if dtype == "qint8":
        quant_min, quant_max = ((-64, 63) if reduce_range else (-128, 127))
        zero_point = 0
    else:  # quint8 (default)
        quant_min, quant_max = ((0, 127) if reduce_range else (0, 255))
        zero_point = 128

    eps = jnp.float32(jnp.finfo(jnp.float32).eps)
    N, C, H, W = x.shape
    total = N * C * H * W
    itemsize = jnp.dtype(x.dtype).itemsize
    alpha = alpha.astype(jnp.float32)

    if observe is None:
        observe = bool(jnp.any(jnp.isinf(alpha)))

    # --- observer (tiled Pallas reduction) — skipped entirely in steady state
    if observe:
        chw = C * H * W
        assert chw % 128 == 0  # TODO(synk): pad/ragged path for arbitrary CHW
        ck = _observer_chunk(chw, N, itemsize)
        x2d = x.reshape(N, chw)
        alpha_obs = pl.pallas_call(
            _absmax_mean_kernel,
            out_shape=jax.ShapeDtypeStruct((1, 1), jnp.float32),
            grid=(chw // ck,),
            in_specs=[pl.BlockSpec((N, ck), lambda k: (0, k))],
            out_specs=pl.BlockSpec((1, 1), lambda k: (0, 0)),
            scratch_shapes=[pltpu.VMEM((N, 1), jnp.float32)],
            compiler_params=pltpu.CompilerParams(
                dimension_semantics=("arbitrary",),
                vmem_limit_bytes=_VMEM_LIMIT_BYTES),
            cost_estimate=pl.CostEstimate(
                flops=2 * total, transcendentals=0,
                bytes_accessed=total * itemsize + 4),
        )(x2d)
        # alpha is only replaced when it is +inf, like the torch buffer
        alpha_new = jnp.where(jnp.isinf(alpha), alpha_obs.reshape(1), alpha)
    else:
        alpha_new = alpha

    # calculate_qparams: scale = max(|alpha| / ((qmax - qmin)/2), eps)
    scale = jnp.maximum(jnp.abs(alpha_new) / (float(quant_max - quant_min) / 2.0),
                        eps)
    inv_scale = 1.0 / scale        # computed once; kernel multiplies

    # --- elementwise fake quant (large lane-dense blocks, native dtype) -----
    assert total % 128 == 0  # TODO(synk): pad/ragged path for arbitrary shapes
    rows, lanes, br = _flat_layout(total, itemsize)
    xf = x.reshape(rows, lanes)

    kernel = functools.partial(_fake_quant_kernel,
                               qmin_z=float(quant_min - zero_point),
                               qmax_z=float(quant_max - zero_point))

    out_flat = pl.pallas_call(
        kernel,
        out_shape=jax.ShapeDtypeStruct((rows, lanes), x.dtype),
        grid=(pl.cdiv(rows, br),),
        in_specs=[
            pl.BlockSpec(memory_space=pltpu.MemorySpace.SMEM),  # alpha     (1,)
            pl.BlockSpec(memory_space=pltpu.MemorySpace.SMEM),  # inv_scale (1,)
            pl.BlockSpec(memory_space=pltpu.MemorySpace.SMEM),  # scale     (1,)
            pl.BlockSpec((br, lanes), lambda i: (i, 0)),
        ],
        out_specs=pl.BlockSpec((br, lanes), lambda i: (i, 0)),
        compiler_params=pltpu.CompilerParams(
            dimension_semantics=("parallel",),        # megacore sharding on v7x
            vmem_limit_bytes=_VMEM_LIMIT_BYTES),
        cost_estimate=pl.CostEstimate(
            flops=8 * total, transcendentals=0,
            bytes_accessed=2 * total * itemsize),
    )(alpha_new, inv_scale, scale, xf)

    out = out_flat.reshape(N, C, H, W)
    # zero_point buffer is int in torch; int32 here (int64 needs jax x64 mode)
    zp = jnp.array([zero_point], dtype=jnp.int32)
    return out, alpha_new, scale, zp


# ---------------------------------------------------------------------------
# Pure-JAX reference (mirrors the PyTorch forward) for a correctness check.
# Uses the same inv_scale multiply as the kernel; differs from torch's
# x/scale only at exact round-half-to-even ties (<= 1 ulp).
# ---------------------------------------------------------------------------
def _ref_forward(x, alpha, quant_min=0, quant_max=255, zero_point=128):
    x = x.astype(jnp.float32)
    per_sample = jnp.max(jnp.abs(x).reshape(x.shape[0], -1), axis=1)
    alpha_v = jnp.where(jnp.isinf(alpha),
                        jnp.mean(per_sample).reshape(1), alpha)
    scale = jnp.maximum(jnp.abs(alpha_v) / (float(quant_max - quant_min) / 2.0),
                        jnp.finfo(jnp.float32).eps)
    inv_scale = 1.0 / scale
    xc = jnp.maximum(jnp.minimum(x, alpha_v), -alpha_v)
    q = jnp.clip(jnp.round(xc * inv_scale) + float(zero_point),
                 float(quant_min), float(quant_max))
    return (q - float(zero_point)) * scale


if __name__ == "__main__":
    key = jax.random.PRNGKey(0)
    # NCHW, like a conv activation
    x = jax.random.normal(key, (2, 4, 16, 16), dtype=jnp.float32) * 3.0

    # alpha initialized to +inf, as in the module __init__ (learnable param)
    alpha0 = jnp.array([jnp.inf], dtype=jnp.float32)

    out, new_alpha, scale, zp = learnable_fake_quantize_forward(x, alpha0)
    out = jax.block_until_ready(out)

    ref = _ref_forward(x, alpha0)
    assert jnp.allclose(out, ref, atol=1e-5, rtol=1e-5), "mismatch vs reference"

    # second call: alpha finite -> observer kernel is skipped entirely
    out2, new_alpha2, _, _ = learnable_fake_quantize_forward(x, new_alpha)
    out2 = jax.block_until_ready(out2)
    assert jnp.allclose(new_alpha2, new_alpha)
    assert jnp.allclose(out2, ref, atol=1e-5, rtol=1e-5)

    print("KERNEL_OK")
</pallas_src>

<mosaic_0001>
module attributes {stable_mosaic.version = 11 : i64} {
  func.func @_absmax_mean_kernel(%arg0: i32, %arg1: memref<2x1024xf32, #tpu.memory_space<vmem>>, %arg2: memref<1x1xf32, #tpu.memory_space<vmem>>, %arg3: memref<2x1xf32, #tpu.memory_space<vmem>>) attributes {dimension_semantics = [#tpu.dimension_semantics<arbitrary>], iteration_bounds = array<i64: 1>, scalar_prefetch = 0 : i64, scratch_operands = 1 : i64, tpu.core_type = #tpu.core_type<tc>, window_params = [{transform_indices = @transform_0, window_bounds = array<i64: 2, 1024>}, {pipeline_mode = #tpu.pipeline_mode<synchronous>, transform_indices = @transform_1, window_bounds = array<i64: 1, 1>}]} {
    %c0_i32 = arith.constant 0 : i32
    %0 = arith.cmpi eq, %arg0, %c0_i32 : i32
    %1 = arith.extui %0 : i1 to i32
    %c0_i32_0 = arith.constant 0 : i32
    %2 = arith.cmpi ne, %1, %c0_i32_0 : i32
    scf.if %2 {
      %cst_8 = arith.constant 0.000000e+00 : f32
      %13 = vector.broadcast %cst_8 : f32 to vector<2x1xf32>
      %c0_9 = arith.constant 0 : index
      %c0_10 = arith.constant 0 : index
      %14 = vector.load %arg3[%c0_9, %c0_10] : memref<2x1xf32, #tpu.memory_space<vmem>>, vector<2x1xf32>
      tpu.vector_store %arg3[%c0_9, %c0_10], %13 {strides = array<i32>} : memref<2x1xf32, #tpu.memory_space<vmem>>, vector<2x1xf32>,
    } else {
    }
    %c0 = arith.constant 0 : index
    %c0_1 = arith.constant 0 : index
    %3 = vector.load %arg1[%c0, %c0_1] : memref<2x1024xf32, #tpu.memory_space<vmem>>, vector<2x1024xf32>
    %4 = math.absf %3 : vector<2x1024xf32>
    %c0_2 = arith.constant 0 : index
    %c0_3 = arith.constant 0 : index
    %5 = vector.load %arg3[%c0_2, %c0_3] : memref<2x1xf32, #tpu.memory_space<vmem>>, vector<2x1xf32>
    %cst = arith.constant dense<0xFF800000> : vector<2xf32>
    %6 = vector.multi_reduction <maximumf>, %4, %cst [1] : vector<2x1024xf32> to vector<2xf32>
    %7 = vector.shape_cast %6 : vector<2xf32> to vector<2x1xf32>
    %8 = arith.maximumf %5, %7 : vector<2x1xf32>
    %c0_4 = arith.constant 0 : index
    %c0_5 = arith.constant 0 : index
    %9 = vector.load %arg3[%c0_4, %c0_5] : memref<2x1xf32, #tpu.memory_space<vmem>>, vector<2x1xf32>
    tpu.vector_store %arg3[%c0_4, %c0_5], %8 {strides = array<i32>} : memref<2x1xf32, #tpu.memory_space<vmem>>, vector<2x1xf32>,
    %c0_i32_6 = arith.constant 0 : i32
    %10 = arith.cmpi eq, %arg0, %c0_i32_6 : i32
    %11 = arith.extui %10 : i1 to i32
    %c0_i32_7 = arith.constant 0 : i32
    %12 = arith.cmpi ne, %11, %c0_i32_7 : i32
    scf.if %12 {
      %c0_8 = arith.constant 0 : index
      %c0_9 = arith.constant 0 : index
      %13 = vector.load %arg3[%c0_8, %c0_9] : memref<2x1xf32, #tpu.memory_space<vmem>>, vector<2x1xf32>
      %cst_10 = arith.constant dense<0.000000e+00> : vector<1xf32>
      %14 = vector.multi_reduction <add>, %13, %cst_10 [0] : vector<2x1xf32> to vector<1xf32>
      %15 = vector.shape_cast %14 : vector<1xf32> to vector<1x1xf32>
      %cst_11 = arith.constant 2.000000e+00 : f32
      %16 = vector.broadcast %cst_11 : f32 to vector<1x1xf32>
      %17 = arith.divf %15, %16 : vector<1x1xf32>
      %c0_12 = arith.constant 0 : index
      %c0_13 = arith.constant 0 : index
      %18 = vector.load %arg2[%c0_12, %c0_13] : memref<1x1xf32, #tpu.memory_space<vmem>>, vector<1x1xf32>
      tpu.vector_store %arg2[%c0_12, %c0_13], %17 {strides = array<i32>} : memref<1x1xf32, #tpu.memory_space<vmem>>, vector<1x1xf32>,
    } else {
    }
    return
  }
  func.func @transform_0(%arg0: i32) -> (i32, i32) {
    %c0_i32 = arith.constant 0 : i32
    %c0_i32_0 = arith.constant 0 : i32
    return %c0_i32, %arg0 : i32, i32
  }
  func.func @transform_1(%arg0: i32) -> (i32, i32) {
    %c0_i32 = arith.constant 0 : i32
    %c0_i32_0 = arith.constant 0 : i32
    %c0_i32_1 = arith.constant 0 : i32
    return %c0_i32, %c0_i32_0 : i32, i32
  }
}

</mosaic_0001>

<llo_original>
// kernel: tpu_custom_call.1
$region0: #{tpu_custom_call.1}
  #allocation0 [shape = 'u32[]', space=smem, size = 0x4, offset = 0x4, fixed_abs, tag = 'smem constant byte address 0x4 - core index']
  #allocation1 [shape = 'u32[72,128]{1,0:T(1,128)}', space=vmem, size = 0x9000, scoped, tag = 'internal scratch']
  #allocation2 [shape = 'f32[2,1]{1,0:T(2,128)}', space=vmem, size = 0x400, scoped, tag = 'scratch operand']
  %s0 = inlined_call_operand.hbm [shape: f32[2,1024], index: 0, kind: input, shape index: {}]
  %s1 = inlined_call_operand.hbm [shape: f32[1,1], index: 1, kind: output, shape index: {}]
  %s2 = sld [smem:[#allocation0]]
  $region26: #{tpu_custom_call.1} parent=0
    _
  %s4 = ssub.s32 1, %s2
  %s5 = scalar_select 0, %s4, %s2
  $region1: #{tpu_custom_call.1} parent=0
    #allocation3 [shape = 'u8[8192]{0}', space=vmem, size = 0x2000, scoped, tag = 'input window, operand 0, single buffered']
    #allocation4 [shape = 's32[1]{0}', space=sflag, size = 0x4, scoped, tag = 'scoped memory for tpu_custom_call.1']
    #allocation5 [shape = 's32[1]{0}', space=sflag, size = 0x4, scoped, tag = 'scoped memory for tpu_custom_call.1']
    #allocation6 [shape = 'u8[512]{0}', space=vmem, size = 0x400, scoped, tag = 'output window, operand 0, single buffered']
    %6 = vsyncpa [#allocation4], 0
    %7 = vsyncpa [#allocation5], 0
    // Predicated region
    $region2: #{tpu_custom_call.1} parent=1 // pred_check
      _
    $region3: #{tpu_custom_call.1} parent=1 // pred_check_branch
      %9 = sbr.rel (0) target = $region5
    $region4: #{tpu_custom_call.1} parent=1 // pred_region
      %11 = vsyncadd [#allocation4], 0
      %s13 = sshll.u32 %s0, 4
      %s14 = int_to_ptr.hbm [resolvable:$true] %s13
      %s15 = sshll.u32 [#allocation3], 4
      %s16 = int_to_ptr.vmem [resolvable:$true] %s15
      %18 = dma.hbm_to_vmem [thread:$0]  %s14, 256, %s16, [#allocation4]
    $region5: #{tpu_custom_call.1} parent=1 // pred_fallthru
      _
    // Predicated region
    $region6: #{tpu_custom_call.1} parent=1 // pred_check
      _
    $region7: #{tpu_custom_call.1} parent=1 // pred_check_branch
      %20 = sbr.rel (0) target = $region9
    $region8: #{tpu_custom_call.1} parent=1 // pred_region
      %22 = dma.done [#allocation4], 256
    $region9: #{tpu_custom_call.1} parent=1 // pred_fallthru
      _
    %p23 = scmp.eq.s32.totalorder 0, 0
    // Predicated region
    $region10: #{tpu_custom_call.1} parent=1 // pred_check
      %p24 = pneg %p23
    $region11: #{tpu_custom_call.1} parent=1 // pred_check_branch
      %26 = sbr.rel (%p24) target = $region13
    $region12: #{tpu_custom_call.1} parent=1 // pred_region
      %vm27 = vcmask 1024
      %28 = vst.msk [vmem:[#allocation2] sm:$0x3] %vm27, 0.0
    $region13: #{tpu_custom_call.1} parent=1 // pred_fallthru
      _
    %v29 = vld [vmem:[#allocation3] sm:$0xff]
    %v30 = vld [vmem:[#allocation3 + $0x8] sm:$0xff]
    %v31 = vand.u32 2147483647, %v29
    %v32 = vand.u32 2147483647, %v30
    %v33 = vld [vmem:[#allocation2] sm:$0x3]
    %36 = vst [vmem:[#allocation1] ss:$4 sm:$0xff] %v31
    %s37 = scalar_lea.vmem [#allocation1], 32
    %38 = vst [vmem:[%s37] ss:$4 sm:$0xff] %v32
    %v39 = vld.sshfl [vmem:[#allocation1] sm:$0xff pattern:$0x73625140]
    %v40 = vld.sshfl [vmem:[#allocation1 + $0x8] sm:$0xff pattern:$0x73625140]
    %v41 = vld.sshfl [vmem:[#allocation1 + $0x10] sm:$0xff pattern:$0x73625140]
    %v42 = vld.sshfl [vmem:[#allocation1 + $0x18] sm:$0xff pattern:$0x73625140]
    %v43 = vld.sshfl [vmem:[#allocation1 + $0x20] sm:$0xff pattern:$0x73625140]
    %v44 = vld.sshfl [vmem:[#allocation1 + $0x28] sm:$0xff pattern:$0x73625140]
    %v45 = vld.sshfl [vmem:[#allocation1 + $0x30] sm:$0xff pattern:$0x73625140]
    %v46 = vld.sshfl [vmem:[#allocation1 + $0x38] sm:$0xff pattern:$0x73625140]
    %vm55 = vcmask 1041408
    %v56 = vsel %vm55, %v39, -inf
    %v57 = vsel %vm55, %v40, -inf
    %v58 = vsel %vm55, %v41, -inf
    %v59 = vsel %vm55, %v42, -inf
    %v60 = vsel %vm55, %v43, -inf
    %v61 = vmax.f32 %v56, %v60
    %v62 = vsel %vm55, %v44, -inf
    %v63 = vmax.f32 %v57, %v62
    %v64 = vsel %vm55, %v45, -inf
    %v65 = vmax.f32 %v58, %v64
    %v66 = vsel %vm55, %v46, -inf
    %v67 = vmax.f32 %v59, %v66
    %v68 = vmax.f32 %v61, %v63
    %v69 = vmax.f32 %v65, %v67
    %v70 = vmax.f32 %v68, %v69
    %71 = vmax.xlane.f32.xlu0 %v70
    %v72 = vpop.xlane.xlu0 %71
    %v73 = vmax.f32 %v33, %v72
    %vm74 = vcmask 1024
    %75 = vst.msk [vmem:[#allocation2] sm:$0x3] %vm74, %v73
    // Predicated region
    $region14: #{tpu_custom_call.1} parent=1 // pred_check
      %p76 = pneg %p23
    $region15: #{tpu_custom_call.1} parent=1 // pred_check_branch
      %78 = sbr.rel (%p76) target = $region17
    $region16: #{tpu_custom_call.1} parent=1 // pred_region
      %v79 = vld [vmem:[#allocation2] sm:$0x3]
      %v80 = vsel %vm74, %v79, 0.0
      %v81 = vrot.slane %v80, 4
      %v82 = vadd.f32 %v80, %v81
      %v83 = vrot.slane %v82, 2
      %v84 = vadd.f32 %v82, %v83
      %v85 = vrot.slane %v84, 1
      %v86 = vadd.f32 %v84, %v85
      %v87 = vrcp.pop 2.0
      %v88 = vmul.f32 2.0, %v87
      %v89 = vsub.f32 1.0, %v88
      %v90 = vmul.f32 %v87, %v89
      %v91 = vadd.f32 %v87, %v90
      %vm92 = vweird.f32 %v87
      %v93 = vsel %vm92, %v87, %v91
      %v94 = vmul.f32 %v86, %v93
      %vm95 = vcmask 0
      %96 = vst.msk [vmem:[#allocation6] sm:$0x1] %vm95, %v94
    $region17: #{tpu_custom_call.1} parent=1 // pred_fallthru
      _
    // Predicated region
    $region18: #{tpu_custom_call.1} parent=1 // pred_check
      _
    $region19: #{tpu_custom_call.1} parent=1 // pred_check_branch
      %98 = sbr.rel (0) target = $region21
    $region20: #{tpu_custom_call.1} parent=1 // pred_region
      %100 = vsyncadd [#allocation5], 0
      %s102 = sshll.u32 [#allocation6], 4
      %s103 = int_to_ptr.vmem [resolvable:$true] %s102
      %s104 = sshll.u32 %s1, 4
      %s105 = int_to_ptr.hbm [resolvable:$true] %s104
      %107 = dma.vmem_to_hbm [thread:$0]  %s103, 16, %s105, [#allocation5]
    $region21: #{tpu_custom_call.1} parent=1 // pred_fallthru
      _
    // Predicated region
    $region22: #{tpu_custom_call.1} parent=1 // pred_check
      _
    $region23: #{tpu_custom_call.1} parent=1 // pred_check_branch
      %109 = sbr.rel (0) target = $region25
    $region24: #{tpu_custom_call.1} parent=1 // pred_region
      %111 = dma.done [#allocation5], 16
    $region25: #{tpu_custom_call.1} parent=1 // pred_fallthru
      _
    %112 = vsyncpa [#allocation4], 1
    %113 = vsyncpa [#allocation5], 1

</llo_original>
